<compile_context>
chip_gen: v6e
topology: v6e:2x2x1
jax: 0.10.0
libtpu: 0.0.40
codegen_flags: <defaults>
</compile_context>

<pallas_src>
from functools import partial

import jax
import jax.numpy as jnp
from jax.experimental import pallas as pl
from jax.experimental.pallas import tpu as pltpu


def _round_up(x, m):
    return (x + m - 1) // m * m


# ----------------------------------------------------------------------------
# Pallas kernels
# ----------------------------------------------------------------------------
def _sage_fused_kernel(self_ref, agg_ref, ws_ref, wa_ref, o_ref, *, compute_dtype):
    # cat([s, a], 1) @ W.T  ==  s @ W_self.T + a @ W_agg.T   (concat never built)
    s = self_ref[...].astype(compute_dtype)      # in-kernel cast (hidden under DMA)
    a = agg_ref[...].astype(compute_dtype)
    acc = jnp.dot(s, ws_ref[...], preferred_element_type=jnp.float32)
    acc = acc + jnp.dot(a, wa_ref[...], preferred_element_type=jnp.float32)
    o_ref[...] = jnp.tanh(acc).astype(o_ref.dtype)   # f32 tanh on EUP, bf16 store


def _sage_gcn_kernel(agg_ref, w_ref, o_ref, *, compute_dtype):
    a = agg_ref[...].astype(compute_dtype)
    acc = jnp.dot(a, w_ref[...], preferred_element_type=jnp.float32)
    o_ref[...] = jnp.tanh(acc).astype(o_ref.dtype)


# ----------------------------------------------------------------------------
# Tiling / pallas_call plumbing
# ----------------------------------------------------------------------------
def _choose_tm(B, tm):
    # tile rows must be a multiple of 8 (sublane); it need NOT divide B
    tm = max(8, (min(tm, _round_up(B, 8)) // 8) * 8)
    # v7x megacore: the 'parallel' B axis is what gets sharded across its 2 TCs,
    # so keep >=2 grid steps (>=8 once B is big enough that per-tile DMA still
    # dwarfs the ~0.35us per-step pipeline overhead).  No-op on v5e/v6e.
    if B > 8:
        target_steps = 8 if B >= 8 * 1024 else 2
        tm = min(tm, max(8, _round_up(-(-B // target_steps), 8)))
    return tm


def _tiled_call(kernel, feats, weights, out_size, *, tm, compute_dtype, out_dtype):
    """feats  : list of (B, D_k) arrays, tiled along B (ragged last block OK).
       weights: list of (D_k, C) arrays, resident (same block every grid step)."""
    B = feats[0].shape[0]
    C = out_size
    tm = _choose_tm(B, tm)

    in_specs = (
        [pl.BlockSpec((tm, f.shape[1]), lambda i: (i, 0)) for f in feats]
        + [pl.BlockSpec(w.shape, lambda i: (0, 0)) for w in weights]
    )
    return pl.pallas_call(
        partial(kernel, compute_dtype=compute_dtype),
        out_shape=jax.ShapeDtypeStruct((B, C), out_dtype),
        grid=(pl.cdiv(B, tm),),                      # ragged final block masked by Pallas
        in_specs=in_specs,
        out_specs=pl.BlockSpec((tm, C), lambda i: (i, 0)),
        compiler_params=pltpu.CompilerParams(
            dimension_semantics=("parallel",),       # v7x: shard B tiles over 2 TCs
            vmem_limit_bytes=32 * 1024 * 1024,       # sized against v7x scoped VMEM
        ),
    )(*feats, *weights)


# ----------------------------------------------------------------------------
# Module port
# ----------------------------------------------------------------------------
class SageLayer:
    """JAX/Pallas port of SageLayer; forward matches the PyTorch semantics.

    compute_dtype / out_dtype are explicit precision knobs: bf16 dot operands +
    bf16 output (f32 accumulate + f32 tanh) by default.  Set both to jnp.float32
    for bit-faithful PyTorch numerics (at ~2x the HBM traffic).
    """

    def __init__(self, input_size, out_size, n, key, gcn=False,
                 compute_dtype=jnp.bfloat16, out_dtype=jnp.bfloat16):
        self.input_size = input_size
        self.out_size = out_size
        self.gcn = gcn
        self.compute_dtype = compute_dtype
        self.out_dtype = out_dtype

        in_dim = input_size if gcn else n * input_size
        # xavier_uniform_ as in init_params()
        limit = (6.0 / (out_size + in_dim)) ** 0.5
        self.weight = jax.random.uniform(
            key, (out_size, in_dim), jnp.float32, minval=-limit, maxval=limit)

        # pre-transpose + pre-cast ONCE (no per-call weight.T / astype)
        wt = self.weight.T.astype(compute_dtype)            # (in_dim, out_size)
        if gcn:
            self.wt = wt
        else:
            # the non-gcn forward concatenates exactly two feature blocks
            assert n * input_size == 2 * input_size, \
                "non-gcn forward concatenates exactly 2 blocks (requires n == 2)"
            self.wt_self = wt[:input_size]                   # (D, C)
            self.wt_agg = wt[input_size:]                    # (D, C)

    def forward(self, self_feats, aggregate_feats, *, tm=4096):
        # NOTE: no .astype() here — features go to the kernel in their native
        # dtype; the bf16 cast happens in VMEM inside the kernel body.
        if self.gcn:
            return _tiled_call(_sage_gcn_kernel, [aggregate_feats], [self.wt],
                               self.out_size, tm=tm,
                               compute_dtype=self.compute_dtype,
                               out_dtype=self.out_dtype)
        return _tiled_call(_sage_fused_kernel, [self_feats, aggregate_feats],
                           [self.wt_self, self.wt_agg], self.out_size, tm=tm,
                           compute_dtype=self.compute_dtype,
                           out_dtype=self.out_dtype)


# ----------------------------------------------------------------------------
if __name__ == "__main__":
    key = jax.random.PRNGKey(0)
    k_self, k_agg, k_w, k_w2 = jax.random.split(key, 4)

    B = 200        # deliberately NOT a multiple of the tile -> exercises ragged last block
    D = 64         # input_size
    C = 128        # out_size (multiple of 128 -> lane-dense output stores)

    self_feats = jax.random.normal(k_self, (B, D), dtype=jnp.float32)
    agg_feats = jax.random.normal(k_agg, (B, D), dtype=jnp.float32)

    # --- non-gcn path: tanh(cat([self, agg], 1) @ W.T) ---
    layer = SageLayer(D, C, 2, k_w, gcn=False)
    out = jax.block_until_ready(layer.forward(self_feats, agg_feats))
    assert out.shape == (B, C) and out.dtype == jnp.bfloat16

    # matched-precision reference (bf16 operands, f32 accumulate, f32 tanh)
    cat_bf16 = jnp.concatenate([self_feats, agg_feats], axis=1).astype(jnp.bfloat16)
    wt_bf16 = layer.weight.T.astype(jnp.bfloat16)
    ref = jnp.tanh(jnp.dot(cat_bf16, wt_bf16, preferred_element_type=jnp.float32))
    assert jnp.allclose(out.astype(jnp.float32), ref, atol=1.5e-2), \
        "non-gcn mismatch vs matched-precision reference"

    # sanity vs the pure-f32 PyTorch-equivalent math
    ref_f32 = jnp.tanh(jnp.concatenate([self_feats, agg_feats], axis=1) @ layer.weight.T)
    assert jnp.allclose(out.astype(jnp.float32), ref_f32, atol=6e-2), \
        "non-gcn mismatch vs f32 reference"

    # --- gcn path: tanh(agg @ W.T) ---
    layer_g = SageLayer(D, C, 2, k_w2, gcn=True)
    out_g = jax.block_until_ready(layer_g.forward(self_feats, agg_feats))
    assert out_g.shape == (B, C)
    ref_g = jnp.tanh(jnp.dot(agg_feats.astype(jnp.bfloat16),
                             layer_g.weight.T.astype(jnp.bfloat16),
                             preferred_element_type=jnp.float32))
    assert jnp.allclose(out_g.astype(jnp.float32), ref_g, atol=1.5e-2), "gcn mismatch"

    print("KERNEL_OK")
</pallas_src>

<mosaic_0001>
module attributes {stable_mosaic.version = 11 : i64} {
  func.func @_sage_fused_kernel(%arg0: i32, %arg1: memref<104x64xf32, #tpu.memory_space<vmem>>, %arg2: memref<104x64xf32, #tpu.memory_space<vmem>>, %arg3: memref<64x128xbf16, #tpu.memory_space<vmem>>, %arg4: memref<64x128xbf16, #tpu.memory_space<vmem>>, %arg5: memref<104x128xbf16, #tpu.memory_space<vmem>>) attributes {dimension_semantics = [#tpu.dimension_semantics<parallel>], iteration_bounds = array<i64: 2>, scalar_prefetch = 0 : i64, scratch_operands = 0 : i64, tpu.core_type = #tpu.core_type<tc>, window_params = [{transform_indices = @transform_0, window_bounds = array<i64: 104, 64>}, {transform_indices = @transform_1, window_bounds = array<i64: 104, 64>}, {pipeline_mode = #tpu.pipeline_mode<synchronous>, transform_indices = @transform_2, window_bounds = array<i64: 64, 128>}, {pipeline_mode = #tpu.pipeline_mode<synchronous>, transform_indices = @transform_3, window_bounds = array<i64: 64, 128>}, {transform_indices = @transform_4, window_bounds = array<i64: 104, 128>}]} {
    %c0 = arith.constant 0 : index
    %c0_0 = arith.constant 0 : index
    %0 = vector.load %arg1[%c0, %c0_0] : memref<104x64xf32, #tpu.memory_space<vmem>>, vector<104x64xf32>
    %1 = arith.truncf %0 : vector<104x64xf32> to vector<104x64xbf16>
    %c0_1 = arith.constant 0 : index
    %c0_2 = arith.constant 0 : index
    %2 = vector.load %arg2[%c0_1, %c0_2] : memref<104x64xf32, #tpu.memory_space<vmem>>, vector<104x64xf32>
    %3 = arith.truncf %2 : vector<104x64xf32> to vector<104x64xbf16>
    %c0_3 = arith.constant 0 : index
    %c0_4 = arith.constant 0 : index
    %4 = vector.load %arg3[%c0_3, %c0_4] : memref<64x128xbf16, #tpu.memory_space<vmem>>, vector<64x128xbf16>
    %cst = arith.constant dense<0.000000e+00> : vector<104x128xf32>
    %5 = tpu.matmul %1, %4, %cst {dimension_numbers = #tpu.dot_dimension_numbers<[1], [0], [0], [1], [0, 0, 1, 1], [], []>} : vector<104x64xbf16>, vector<64x128xbf16>, vector<104x128xf32> -> vector<104x128xf32>
    %c0_5 = arith.constant 0 : index
    %c0_6 = arith.constant 0 : index
    %6 = vector.load %arg4[%c0_5, %c0_6] : memref<64x128xbf16, #tpu.memory_space<vmem>>, vector<64x128xbf16>
    %cst_7 = arith.constant dense<0.000000e+00> : vector<104x128xf32>
    %7 = tpu.matmul %3, %6, %cst_7 {dimension_numbers = #tpu.dot_dimension_numbers<[1], [0], [0], [1], [0, 0, 1, 1], [], []>} : vector<104x64xbf16>, vector<64x128xbf16>, vector<104x128xf32> -> vector<104x128xf32>
    %8 = arith.addf %5, %7 : vector<104x128xf32>
    %9 = math.tanh %8 : vector<104x128xf32>
    %10 = arith.truncf %9 : vector<104x128xf32> to vector<104x128xbf16>
    %c0_8 = arith.constant 0 : index
    %c0_9 = arith.constant 0 : index
    %11 = vector.load %arg5[%c0_8, %c0_9] : memref<104x128xbf16, #tpu.memory_space<vmem>>, vector<104x128xbf16>
    tpu.vector_store %arg5[%c0_8, %c0_9], %10 {strides = array<i32>} : memref<104x128xbf16, #tpu.memory_space<vmem>>, vector<104x128xbf16>,
    return
  }
  func.func @transform_0(%arg0: i32) -> (i32, i32) {
    %c0_i32 = arith.constant 0 : i32
    %c0_i32_0 = arith.constant 0 : i32
    return %arg0, %c0_i32 : i32, i32
  }
  func.func @transform_1(%arg0: i32) -> (i32, i32) {
    %c0_i32 = arith.constant 0 : i32
    %c0_i32_0 = arith.constant 0 : i32
    return %arg0, %c0_i32 : i32, i32
  }
  func.func @transform_2(%arg0: i32) -> (i32, i32) {
    %c0_i32 = arith.constant 0 : i32
    %c0_i32_0 = arith.constant 0 : i32
    %c0_i32_1 = arith.constant 0 : i32
    return %c0_i32, %c0_i32_0 : i32, i32
  }
  func.func @transform_3(%arg0: i32) -> (i32, i32) {
    %c0_i32 = arith.constant 0 : i32
    %c0_i32_0 = arith.constant 0 : i32
    %c0_i32_1 = arith.constant 0 : i32
    return %c0_i32, %c0_i32_0 : i32, i32
  }
  func.func @transform_4(%arg0: i32) -> (i32, i32) {
    %c0_i32 = arith.constant 0 : i32
    %c0_i32_0 = arith.constant 0 : i32
    return %arg0, %c0_i32 : i32, i32
  }
}

</mosaic_0001>

<llo_original>
// kernel: tpu_custom_call.1
$region0: #{tpu_custom_call.1}
  #allocation0 [shape = 'u32[]', space=smem, size = 0x4, offset = 0x4, fixed_abs, tag = 'smem constant byte address 0x4 - core index']
  #allocation1 [shape = 'u32[144,128]{1,0:T(1,128)}', space=vmem, size = 0x12000, scoped, tag = 'internal scratch']
  %s0 = inlined_call_operand.vmem [shape: f32[200,64], index: 0, kind: input, shape index: {}]
  %s1 = inlined_call_operand.vmem [shape: f32[200,64], index: 1, kind: input, shape index: {}]
  %s2 = inlined_call_operand.vmem [shape: bf16[64,128], index: 2, kind: input, shape index: {}]
  %s3 = inlined_call_operand.vmem [shape: bf16[64,128], index: 3, kind: input, shape index: {}]
  %s4 = inlined_call_operand.hbm [shape: bf16[200,128], index: 4, kind: output, shape index: {}]
  %s5 = sld [smem:[#allocation0]]
  $region49: #{tpu_custom_call.1} parent=0
    _
  %s7 = ssub.s32 1, %s5
  %s8 = scalar_select 0, %s7, %s5
  $region1: #{tpu_custom_call.1} parent=0
    #allocation2 [shape = 'u8[53248]{0}', space=vmem, size = 0xd000, scoped, tag = 'output window, operand 0']
    #allocation3 [shape = 's32[2]{0}', space=sflag, size = 0x8, scoped, tag = 'scoped memory for tpu_custom_call.1']
    %9 = vsyncpa [#allocation3], 0
    %s10 = scalar_lea.sflag [#allocation3], 1
    %11 = vsyncpa %s10, 0
    loop: start=0, step=1, limit=4
    $region2: #{tpu_custom_call.1} parent=1 // loop_pre_header
      _
    $region3: #{tpu_custom_call.1} parent=1 // loop_header
      %s13 = sphi 0, %s17
      %p14 = scmp.ge.s32.totalorder %s13, 4
      %s23 = sphi 0, %s25
      %s26 = sphi 0, %s23
      %s27 = sphi 0, %s26
      %s43 = sphi 0, %s27
      %s49 = sphi 0, %s51
      %s52 = sphi 0, %s49
      %s53 = sphi 0, %s52
      %s69 = sphi 0, %s53
      %s73 = sphi 0, %s73
      %s75 = sphi 0, %s73
      %s76 = sphi 0, %s75
      %s90 = sphi 0, %s76
      %s94 = sphi 0, %s94
      %s96 = sphi 0, %s94
      %s97 = sphi 0, %s96
      %s111 = sphi 0, %s97
      %s117 = sphi 0, %s119
      %s120 = sphi 0, %s117
      %s121 = sphi 0, %s120
      %s137 = sphi 0, %s121
    $region4: #{tpu_custom_call.1} parent=1 // loop_header_branch
      %16 = sbr.rel (%p14) target = $region8
    $region5: #{tpu_custom_call.1} parent=1 // loop_body
      %s18 = ssub.s32 %s13, 1
      %s19 = ssub.s32 %s13, 2
      %s20 = sadd.s32 %s13, 1
      %s21 = ssub.s32 %s13, %s20
      %p22 = scmp.eq.s32.totalorder %s21, 0
      %s24 = sadd.s32 %s23, 1
      %s25 = scalar_select %p22, %s23, %s24
      %p28 = pneg %p22
      %p29 = scmp.eq.s32.totalorder %s13, 1
      %p30 = por %p28, %p29
      %p31 = scmp.ne.s32.totalorder %s23, %s26
      %p32 = scmp.eq.s32.totalorder %s13, 0
      %p33 = por %p31, %p32
      %p34 = scmp.ne.s32.totalorder %s23, %s26
      %p35 = scmp.eq.s32.totalorder %s18, 1
      %p36 = por %p34, %p35
      %p37 = scmp.ne.s32.totalorder %s26, %s27
      %p38 = scmp.eq.s32.totalorder %s18, 0
      %p39 = por %p37, %p38
      %p40 = scmp.ne.s32.totalorder %s26, %s27
      %p41 = scmp.eq.s32.totalorder %s19, 1
      %p42 = por %p40, %p41
      %p44 = scmp.ne.s32.totalorder %s27, %s43
      %p45 = scmp.eq.s32.totalorder %s19, 0
      %p46 = por %p44, %p45
      %s47 = ssub.s32 %s13, %s20
      %p48 = scmp.eq.s32.totalorder %s47, 0
      %s50 = sadd.s32 %s49, 1
      %s51 = scalar_select %p48, %s49, %s50
      %p54 = pneg %p48
      %p55 = scmp.eq.s32.totalorder %s13, 1
      %p56 = por %p54, %p55
      %p57 = scmp.ne.s32.totalorder %s49, %s52
      %p58 = scmp.eq.s32.totalorder %s13, 0
      %p59 = por %p57, %p58
      %p60 = scmp.ne.s32.totalorder %s49, %s52
      %p61 = scmp.eq.s32.totalorder %s18, 1
      %p62 = por %p60, %p61
      %p63 = scmp.ne.s32.totalorder %s52, %s53
      %p64 = scmp.eq.s32.totalorder %s18, 0
      %p65 = por %p63, %p64
      %p66 = scmp.ne.s32.totalorder %s52, %s53
      %p67 = scmp.eq.s32.totalorder %s19, 1
      %p68 = por %p66, %p67
      %p70 = scmp.ne.s32.totalorder %s53, %s69
      %p71 = scmp.eq.s32.totalorder %s19, 0
      %p72 = por %p70, %p71
      %s74 = sadd.s32 %s73, 1
      %p77 = scmp.eq.s32.totalorder %s13, 1
      %p78 = scmp.ne.s32.totalorder %s73, %s75
      %p79 = scmp.eq.s32.totalorder %s13, 0
      %p80 = por %p78, %p79
      %p81 = scmp.ne.s32.totalorder %s73, %s75
      %p82 = scmp.eq.s32.totalorder %s18, 1
      %p83 = por %p81, %p82
      %p84 = scmp.ne.s32.totalorder %s75, %s76
      %p85 = scmp.eq.s32.totalorder %s18, 0
      %p86 = por %p84, %p85
      %p87 = scmp.ne.s32.totalorder %s75, %s76
      %p88 = scmp.eq.s32.totalorder %s19, 1
      %p89 = por %p87, %p88
      %p91 = scmp.ne.s32.totalorder %s76, %s90
      %p92 = scmp.eq.s32.totalorder %s19, 0
      %p93 = por %p91, %p92
      %s95 = sadd.s32 %s94, 1
      %p98 = scmp.eq.s32.totalorder %s13, 1
      %p99 = scmp.ne.s32.totalorder %s94, %s96
      %p100 = scmp.eq.s32.totalorder %s13, 0
      %p101 = por %p99, %p100
      %p102 = scmp.ne.s32.totalorder %s94, %s96
      %p103 = scmp.eq.s32.totalorder %s18, 1
      %p104 = por %p102, %p103
      %p105 = scmp.ne.s32.totalorder %s96, %s97
      %p106 = scmp.eq.s32.totalorder %s18, 0
      %p107 = por %p105, %p106
      %p108 = scmp.ne.s32.totalorder %s96, %s97
      %p109 = scmp.eq.s32.totalorder %s19, 1
      %p110 = por %p108, %p109
      %p112 = scmp.ne.s32.totalorder %s97, %s111
      %p113 = scmp.eq.s32.totalorder %s19, 0
      %p114 = por %p112, %p113
      %s115 = ssub.s32 %s13, %s20
      %p116 = scmp.eq.s32.totalorder %s115, 0
      %s118 = sadd.s32 %s117, 1
      %s119 = scalar_select %p116, %s117, %s118
      %p122 = pneg %p116
      %p123 = scmp.eq.s32.totalorder %s13, 1
      %p124 = por %p122, %p123
      %p125 = scmp.ne.s32.totalorder %s117, %s120
      %p126 = scmp.eq.s32.totalorder %s13, 0
      %p127 = por %p125, %p126
      %p128 = scmp.ne.s32.totalorder %s117, %s120
      %p129 = scmp.eq.s32.totalorder %s18, 1
      %p130 = por %p128, %p129
      %p131 = scmp.ne.s32.totalorder %s120, %s121
      %p132 = scmp.eq.s32.totalorder %s18, 0
      %p133 = por %p131, %p132
      %p134 = scmp.ne.s32.totalorder %s120, %s121
      %p135 = scmp.eq.s32.totalorder %s19, 1
      %p136 = por %p134, %p135
      %p138 = scmp.ne.s32.totalorder %s121, %s137
      %p139 = scmp.eq.s32.totalorder %s19, 0
      %p140 = por %p138, %p139
      %p141 = scmp.le.s32.totalorder 1, %s13
      %p142 = scmp.lt.s32.totalorder %s13, 3
      %p143 = pnand %p141, %p142
      %p144 = pneg %p143
      // Predicated region
      $region9: #{tpu_custom_call.1} parent=5 // pred_check
        _
      $region10: #{tpu_custom_call.1} parent=5 // pred_check_branch
        %146 = sbr.rel (%p143) target = $region12
      $region11: #{tpu_custom_call.1} parent=5 // pred_region
        %s147 = ssub.s32 %s13, 1
        // Predicated region
        $region13: #{tpu_custom_call.1} parent=11 // pred_check
          %p148 = pneg %p86
        $region14: #{tpu_custom_call.1} parent=11 // pred_check_branch
          %150 = sbr.rel (%p148) target = $region16
        $region15: #{tpu_custom_call.1} parent=11 // pred_region
          _
        $region16: #{tpu_custom_call.1} parent=11 // pred_fallthru
          _
        // Predicated region
        $region17: #{tpu_custom_call.1} parent=11 // pred_check
          %p151 = pneg %p107
        $region18: #{tpu_custom_call.1} parent=11 // pred_check_branch
          %153 = sbr.rel (%p151) target = $region20
        $region19: #{tpu_custom_call.1} parent=11 // pred_region
          _
        $region20: #{tpu_custom_call.1} parent=11 // pred_fallthru
          _
      $region12: #{tpu_custom_call.1} parent=5 // pred_fallthru
        _
      %p154 = scmp.lt.s32.totalorder %s13, 2
      // Predicated region
      $region21: #{tpu_custom_call.1} parent=5 // pred_check
        %p155 = pneg %p154
      $region22: #{tpu_custom_call.1} parent=5 // pred_check_branch
        %157 = sbr.rel (%p155) target = $region24
      $region23: #{tpu_custom_call.1} parent=5 // pred_region
        // Predicated region
        $region25: #{tpu_custom_call.1} parent=23 // pred_check
          %p158 = pneg %p33
        $region26: #{tpu_custom_call.1} parent=23 // pred_check_branch
          %160 = sbr.rel (%p158) target = $region28
        $region27: #{tpu_custom_call.1} parent=23 // pred_region
          %s161 = smul.u32 13, %s13
          %s162 = ssub.s32 25, %s161
          %p163 = scmp.lt.s32.totalorder %s162, 13
          %s164 = scalar_select %p163, %s162, 13
          %s165 = smul.u32 128, %s164
          %p166 = scmp.lt.s32.totalorder %s161, 24
          %s167 = scalar_select %p166, %s161, 24
          %s168 = smul.addr %s167, 8
          %s169 = scalar_lea.vmem %s0, %s168
          %s170 = smul.u32 13, %s13
          %s171 = ssub.s32 25, %s170
          %p172 = scmp.lt.s32.totalorder %s171, 13
          %s173 = scalar_select %p172, %s171, 13
          %s174 = smul.u32 128, %s173
        $region28: #{tpu_custom_call.1} parent=23 // pred_fallthru
          _
        // Predicated region
        $region29: #{tpu_custom_call.1} parent=23 // pred_check
          %p175 = pneg %p59
        $region30: #{tpu_custom_call.1} parent=23 // pred_check_branch
          %177 = sbr.rel (%p175) target = $region32
        $region31: #{tpu_custom_call.1} parent=23 // pred_region
          %s178 = smul.u32 13, %s13
          %s179 = ssub.s32 25, %s178
          %p180 = scmp.lt.s32.totalorder %s179, 13
          %s181 = scalar_select %p180, %s179, 13
          %s182 = smul.u32 128, %s181
          %p183 = scmp.lt.s32.totalorder %s178, 24
          %s184 = scalar_select %p183, %s178, 24
          %s185 = smul.addr %s184, 8
          %s186 = scalar_lea.vmem %s1, %s185
          %s187 = smul.u32 13, %s13
          %s188 = ssub.s32 25, %s187
          %p189 = scmp.lt.s32.totalorder %s188, 13
          %s190 = scalar_select %p189, %s188, 13
          %s191 = smul.u32 128, %s190
        $region32: #{tpu_custom_call.1} parent=23 // pred_fallthru
          _
      $region24: #{tpu_custom_call.1} parent=5 // pred_fallthru
        _
      %p192 = scmp.le.s32.totalorder 1, %s13
      %p193 = scmp.lt.s32.totalorder %s13, 3
      %p194 = pnand %p192, %p193
      %p195 = pneg %p194
      // Predicated region
      $region33: #{tpu_custom_call.1} parent=5 // pred_check
        _
      $region34: #{tpu_custom_call.1} parent=5 // pred_check_branch
        %197 = sbr.rel (%p194) target = $region36
      $region35: #{tpu_custom_call.1} parent=5 // pred_region
        %s198 = ssub.s32 %s13, 1
        %s199 = smul.u32 13, %s18
        %s200 = ssub.s32 25, %s199
        %p201 = scmp.lt.s32.totalorder %s200, 13
        %s202 = scalar_select %p201, %s200, 13
        %s203 = smul.u32 128, %s202
        %p204 = scmp.lt.s32.totalorder %s199, 24
        %s205 = scalar_select %p204, %s199, 24
        %s206 = smul.addr %s205, 8
        %s207 = scalar_lea.vmem %s0, %s206
        %p208 = pneg %p39
        %p209 = pneg %p36
        %s210 = smul.u32 13, %s18
        %s211 = ssub.s32 25, %s210
        %p212 = scmp.lt.s32.totalorder %s211, 13
        %s213 = scalar_select %p212, %s211, 13
        %s214 = smul.u32 128, %s213
        %p215 = scmp.lt.s32.totalorder %s210, 24
        %s216 = scalar_select %p215, %s210, 24
        %s217 = smul.addr %s216, 8
        %s218 = scalar_lea.vmem %s1, %s217
        %p219 = pneg %p65
        %p220 = pneg %p62
        %p221 = pneg %p86
        %p222 = pneg %p83
        %p223 = pneg %p107
        %p224 = pneg %p104
        %p225 = pneg %p133
        %p226 = pneg %p130
        %s227 = sand.u32 %s120, 1
        %s228 = scalar_lea.sflag [#allocation3], %s227
        %s229 = sand.u32 %s120, 1
        %s230 = smul.addr %s229, 52
        %s231 = scalar_lea.vmem [#allocation2], %s230
        %s232 = smul.u32 13, %s18
        %s233 = ssub.s32 25, %s232
        %p234 = scmp.lt.s32.totalorder %s233, 13
        %s235 = scalar_select %p234, %s233, 13
        %s236 = smul.u32 128, %s235
        %p237 = scmp.lt.s32.totalorder %s232, 24
        %s238 = scalar_select %p237, %s232, 24
        %s239 = smul.addr %s238, 8
        %s240 = scalar_lea.vmem %s0, %s239
        %s241 = smul.u32 13, %s18
        %s242 = ssub.s32 25, %s241
        %p243 = scmp.lt.s32.totalorder %s242, 13
        %s244 = scalar_select %p243, %s242, 13
        %s245 = smul.u32 128, %s244
        %s246 = smul.u32 13, %s18
        %s247 = ssub.s32 25, %s246
        %p248 = scmp.lt.s32.totalorder %s247, 13
        %s249 = scalar_select %p248, %s247, 13
        %s250 = smul.u32 128, %s249
        %p251 = scmp.lt.s32.totalorder %s246, 24
        %s252 = scalar_select %p251, %s246, 24
        %s253 = smul.addr %s252, 8
        %s254 = scalar_lea.vmem %s1, %s253
        %s255 = smul.u32 13, %s18
        %s256 = ssub.s32 25, %s255
        %p257 = scmp.lt.s32.totalorder %s256, 13
        %s258 = scalar_select %p257, %s256, 13
        %s259 = smul.u32 128, %s258
        %s260 = smul.u32 13, %s18
        %s261 = ssub.s32 25, %s260
        %p262 = scmp.lt.s32.totalorder %s261, 13
        %s263 = scalar_select %p262, %s261, 13
        %s264 = smul.u32 64, %s263
        %v266 = vld [vmem:[%s240] sm:$0xff]
        %v267 = vld [vmem:[%s240 + $0x8] sm:$0xff]
        %v268 = vld [vmem:[%s240 + $0x10] sm:$0xff]
        %v269 = vld [vmem:[%s240 + $0x18] sm:$0xff]
        %v270 = vld [vmem:[%s240 + $0x20] sm:$0xff]
        %v271 = vld [vmem:[%s240 + $0x28] sm:$0xff]
        %v272 = vld [vmem:[%s240 + $0x30] sm:$0xff]
        %v273 = vld [vmem:[%s240 + $0x38] sm:$0xff]
        %v274 = vld [vmem:[%s240 + $0x40] sm:$0xff]
        %v275 = vld [vmem:[%s240 + $0x48] sm:$0xff]
        %v276 = vld [vmem:[%s240 + $0x50] sm:$0xff]
        %v277 = vld [vmem:[%s240 + $0x58] sm:$0xff]
        %v278 = vld [vmem:[%s240 + $0x60] sm:$0xff]
        %v279 = vpack.c.bf16 %v267, %v266
        %v280 = vpack.c.bf16 %v269, %v268
        %v281 = vpack.c.bf16 %v271, %v270
        %v282 = vpack.c.bf16 %v273, %v272
        %v283 = vpack.c.bf16 %v275, %v274
        %v284 = vpack.c.bf16 %v277, %v276
        %v285 = vpack.c.bf16 %v278, %v278
        %v286 = vld [vmem:[%s254] sm:$0xff]
        %v287 = vld [vmem:[%s254 + $0x8] sm:$0xff]
        %v288 = vld [vmem:[%s254 + $0x10] sm:$0xff]
        %v289 = vld [vmem:[%s254 + $0x18] sm:$0xff]
        %v290 = vld [vmem:[%s254 + $0x20] sm:$0xff]
        %v291 = vld [vmem:[%s254 + $0x28] sm:$0xff]
        %v292 = vld [vmem:[%s254 + $0x30] sm:$0xff]
        %v293 = vld [vmem:[%s254 + $0x38] sm:$0xff]
        %v294 = vld [vmem:[%s254 + $0x40] sm:$0xff]
        %v295 = vld [vmem:[%s254 + $0x48] sm:$0xff]
        %v296 = vld [vmem:[%s254 + $0x50] sm:$0xff]
        %v297 = vld [vmem:[%s254 + $0x58] sm:$0xff]
        %v298 = vld [vmem:[%s254 + $0x60] sm:$0xff]
        %v299 = vpack.c.bf16 %v287, %v286
        %v300 = vpack.c.bf16 %v289, %v288
        %v301 = vpack.c.bf16 %v291, %v290
        %v302 = vpack.c.bf16 %v293, %v292
        %v303 = vpack.c.bf16 %v295, %v294
        %v304 = vpack.c.bf16 %v297, %v296
        %v305 = vpack.c.bf16 %v298, %v298
        %v306 = vld [vmem:[%s2] sm:$0xf]
        %v307 = vld [vmem:[%s2 + $0x4] sm:$0xf]
        %v308 = vld [vmem:[%s2 + $0x8] sm:$0xf]
        %v309 = vld [vmem:[%s2 + $0xc] sm:$0xf]
        %v310 = vld [vmem:[%s2 + $0x10] sm:$0xf]
        %v311 = vld [vmem:[%s2 + $0x14] sm:$0xf]
        %v312 = vld [vmem:[%s2 + $0x18] sm:$0xf]
        %v313 = vld [vmem:[%s2 + $0x1c] sm:$0xf]
        %v314 = vld [vmem:[%s3] sm:$0xf]
        %v315 = vld [vmem:[%s3 + $0x4] sm:$0xf]
        %v316 = vld [vmem:[%s3 + $0x8] sm:$0xf]
        %v317 = vld [vmem:[%s3 + $0xc] sm:$0xf]
        %v318 = vld [vmem:[%s3 + $0x10] sm:$0xf]
        %v319 = vld [vmem:[%s3 + $0x14] sm:$0xf]
        %v320 = vld [vmem:[%s3 + $0x18] sm:$0xf]
        %v321 = vld [vmem:[%s3 + $0x1c] sm:$0xf]
        %v330 = vunpack.c.l.b16 %v314
        %v331 = vunpack.c.l.b16 %v315
        %v332 = vunpack.c.l.b16 %v316
        %v333 = vunpack.c.l.b16 %v317
        %v334 = vunpack.c.l.b16 %v318
        %v335 = vunpack.c.l.b16 %v319
        %v336 = vunpack.c.l.b16 %v320
        %v337 = vunpack.c.l.b16 %v321
        %v338 = vpack.c.b16 %v331, %v330
        %v339 = vpack.c.b16 %v333, %v332
        %v340 = vpack.c.b16 %v335, %v334
        %v341 = vpack.c.b16 %v337, %v336
        %vm346 = vcmask 523264
        %v348 = vsel %vm346, %v299, 0
        %v351 = vsel %vm346, %v300, 0
        %v354 = vsel %vm346, %v301, 0
        %v357 = vsel %vm346, %v302, 0
        %v360 = vsel %vm346, %v303, 0
        %v363 = vsel %vm346, %v304, 0
        %v366 = vsel %vm346, %v305, 0
        %368 = vmatprep.subr.bf16.mxu0 0
        %369 = vmatpush1.bf16.msra.mxu0 0
        %370 = vmatprep.subr.bf16.mxu0 0
        %371 = vmatpush1.bf16.msra.mxu0 0
        %372 = vmatprep.subr.bf16.mxu0 0
        %373 = vmatpush1.bf16.msra.mxu0 0
        %374 = vmatprep.subr.bf16.mxu0 0
        %375 = vmatpush1.bf16.msra.mxu0 0
        %376 = vmatprep.subr.bf16.mxu0 0
        %377 = vmatpush1.bf16.msra.mxu0 %v341
        %378 = vmatprep.subr.bf16.mxu0 0
        %379 = vmatpush1.bf16.msra.mxu0 %v340
        %380 = vmatprep.subr.bf16.mxu0 0
        %381 = vmatpush1.bf16.msra.mxu0 %v339
        %382 = vmatprep.subr.bf16.mxu0 0
        %383 = vmatpush1.bf16.msra.mxu0 %v338
        %384 = vmatprep.subr.bf16.mxu0 0
        %385 = vmatpush2.bf16.msra.mxu0 0
        %386 = vmatprep.subr.bf16.mxu0 0
        %387 = vmatpush2.bf16.msra.mxu0 0
        %388 = vmatprep.subr.bf16.mxu0 0
        %389 = vmatpush2.bf16.msra.mxu0 0
        %390 = vmatprep.subr.bf16.mxu0 0
        %391 = vmatpush2.bf16.msra.mxu0 0
        %392 = vmatprep.subr.bf16.mxu0 0
        %393 = vmatpush2.bf16.msra.mxu0 0
        %394 = vmatprep.subr.bf16.mxu0 0
        %395 = vmatpush2.bf16.msra.mxu0 0
        %396 = vmatprep.subr.bf16.mxu0 0
        %397 = vmatpush2.bf16.msra.mxu0 0
        %398 = vmatprep.subr.bf16.mxu0 0
        %399 = vmatpush2.bf16.msra.mxu0 0
        %400 = vmatprep.mubr.bf16.mxu0 0
        %401 = vmatmul.mubr.bf16.gmra.mxu0 %v348
        %v402 = vpop.f32.mrf.mxu0
        %v403 = vadd.f32 0.0, %v402
        %v404 = vpop.f32.mrf.mxu0
        %v405 = vpop.f32.mrf.mxu0
        %v406 = vadd.f32 0.0, %v405
        %v407 = vpop.f32.mrf.mxu0
        %408 = vmatprep.mubr.bf16.mxu0 0
        %409 = vmatmul.mubr.bf16.gmra.mxu0 %v351
        %v410 = vpop.f32.mrf.mxu0
        %v411 = vadd.f32 0.0, %v410
        %v412 = vpop.f32.mrf.mxu0
        %v413 = vpop.f32.mrf.mxu0
        %v414 = vadd.f32 0.0, %v413
        %v415 = vpop.f32.mrf.mxu0
        %416 = vmatprep.mubr.bf16.mxu0 0
        %417 = vmatmul.mubr.bf16.gmra.mxu0 %v354
        %v418 = vpop.f32.mrf.mxu0
        %v419 = vadd.f32 0.0, %v418
        %v420 = vpop.f32.mrf.mxu0
        %v421 = vpop.f32.mrf.mxu0
        %v422 = vadd.f32 0.0, %v421
        %v423 = vpop.f32.mrf.mxu0
        %424 = vmatprep.mubr.bf16.mxu0 0
        %425 = vmatmul.mubr.bf16.gmra.mxu0 %v357
        %v426 = vpop.f32.mrf.mxu0
        %v427 = vadd.f32 0.0, %v426
        %v428 = vpop.f32.mrf.mxu0
        %v429 = vpop.f32.mrf.mxu0
        %v430 = vadd.f32 0.0, %v429
        %v431 = vpop.f32.mrf.mxu0
        %432 = vmatprep.mubr.bf16.mxu0 0
        %433 = vmatmul.mubr.bf16.gmra.mxu0 %v360
        %v434 = vpop.f32.mrf.mxu0
        %v435 = vadd.f32 0.0, %v434
        %v436 = vpop.f32.mrf.mxu0
        %v437 = vpop.f32.mrf.mxu0
        %v438 = vadd.f32 0.0, %v437
        %v439 = vpop.f32.mrf.mxu0
        %440 = vmatprep.mubr.bf16.mxu0 0
        %441 = vmatmul.mubr.bf16.gmra.mxu0 %v363
        %v442 = vpop.f32.mrf.mxu0
        %v443 = vadd.f32 0.0, %v442
        %v444 = vpop.f32.mrf.mxu0
        %v445 = vpop.f32.mrf.mxu0
        %v446 = vadd.f32 0.0, %v445
        %v447 = vpop.f32.mrf.mxu0
        %448 = vmatprep.mubr.bf16.mxu0 0
        %449 = vmatmul.mubr.bf16.gmra.mxu0 %v366
        %v450 = vpop.f32.mrf.mxu0
        %v451 = vadd.f32 0.0, %v450
        %v452 = vpop.f32.mrf.mxu0
        %v453 = vpop.f32.mrf.mxu0
        %v454 = vpop.f32.mrf.mxu0
        %455 = vdwg.mxu0
        %v464 = vunpack.c.l.b16 %v306
        %v465 = vunpack.c.l.b16 %v307
        %v466 = vunpack.c.l.b16 %v308
        %v467 = vunpack.c.l.b16 %v309
        %v468 = vunpack.c.l.b16 %v310
        %v469 = vunpack.c.l.b16 %v311
        %v470 = vunpack.c.l.b16 %v312
        %v471 = vunpack.c.l.b16 %v313
        %v472 = vpack.c.b16 %v465, %v464
        %v473 = vpack.c.b16 %v467, %v466
        %v474 = vpack.c.b16 %v469, %v468
        %v475 = vpack.c.b16 %v471, %v470
        %v481 = vsel %vm346, %v279, 0
        %v484 = vsel %vm346, %v280, 0
        %v487 = vsel %vm346, %v281, 0
        %v490 = vsel %vm346, %v282, 0
        %v493 = vsel %vm346, %v283, 0
        %v496 = vsel %vm346, %v284, 0
        %v499 = vsel %vm346, %v285, 0
        %501 = vmatprep.subr.bf16.mxu0 0
        %502 = vmatpush1.bf16.msra.mxu0 0
        %503 = vmatprep.subr.bf16.mxu0 0
        %504 = vmatpush1.bf16.msra.mxu0 0
        %505 = vmatprep.subr.bf16.mxu0 0
        %506 = vmatpush1.bf16.msra.mxu0 0
        %507 = vmatprep.subr.bf16.mxu0 0
        %508 = vmatpush1.bf16.msra.mxu0 0
        %509 = vmatprep.subr.bf16.mxu0 0
        %510 = vmatpush1.bf16.msra.mxu0 %v475
        %511 = vmatprep.subr.bf16.mxu0 0
        %512 = vmatpush1.bf16.msra.mxu0 %v474
        %513 = vmatprep.subr.bf16.mxu0 0
        %514 = vmatpush1.bf16.msra.mxu0 %v473
        %515 = vmatprep.subr.bf16.mxu0 0
        %516 = vmatpush1.bf16.msra.mxu0 %v472
        %517 = vmatprep.subr.bf16.mxu0 0
        %518 = vmatpush2.bf16.msra.mxu0 0
        %519 = vmatprep.subr.bf16.mxu0 0
        %520 = vmatpush2.bf16.msra.mxu0 0
        %521 = vmatprep.subr.bf16.mxu0 0
        %522 = vmatpush2.bf16.msra.mxu0 0
        %523 = vmatprep.subr.bf16.mxu0 0
        %524 = vmatpush2.bf16.msra.mxu0 0
        %525 = vmatprep.subr.bf16.mxu0 0
        %526 = vmatpush2.bf16.msra.mxu0 0
        %527 = vmatprep.subr.bf16.mxu0 0
        %528 = vmatpush2.bf16.msra.mxu0 0
        %529 = vmatprep.subr.bf16.mxu0 0
        %530 = vmatpush2.bf16.msra.mxu0 0
        %531 = vmatprep.subr.bf16.mxu0 0
        %532 = vmatpush2.bf16.msra.mxu0 0
        %533 = vmatprep.mubr.bf16.mxu0 0
        %534 = vmatmul.mubr.bf16.gmra.mxu0 %v481
        %v535 = vpop.f32.mrf.mxu0
        %v536 = vadd.f32 %v403, %v535
        %v537 = vpop.f32.mrf.mxu0
        %v538 = vpop.f32.mrf.mxu0
        %v539 = vadd.f32 %v406, %v538
        %v540 = vpop.f32.mrf.mxu0
        %541 = vmatprep.mubr.bf16.mxu0 0
        %542 = vmatmul.mubr.bf16.gmra.mxu0 %v484
        %v543 = vpop.f32.mrf.mxu0
        %v544 = vadd.f32 %v411, %v543
        %v545 = vpop.f32.mrf.mxu0
        %v546 = vpop.f32.mrf.mxu0
        %v547 = vadd.f32 %v414, %v546
        %v548 = vpop.f32.mrf.mxu0
        %549 = vmatprep.mubr.bf16.mxu0 0
        %550 = vmatmul.mubr.bf16.gmra.mxu0 %v487
        %v551 = vpop.f32.mrf.mxu0
        %v552 = vadd.f32 %v419, %v551
        %v553 = vpop.f32.mrf.mxu0
        %v554 = vpop.f32.mrf.mxu0
        %v555 = vadd.f32 %v422, %v554
        %v556 = vpop.f32.mrf.mxu0
        %557 = vmatprep.mubr.bf16.mxu0 0
        %558 = vmatmul.mubr.bf16.gmra.mxu0 %v490
        %v559 = vpop.f32.mrf.mxu0
        %v560 = vadd.f32 %v427, %v559
        %v561 = vpop.f32.mrf.mxu0
        %v562 = vpop.f32.mrf.mxu0
        %v563 = vadd.f32 %v430, %v562
        %v564 = vpop.f32.mrf.mxu0
        %565 = vmatprep.mubr.bf16.mxu0 0
        %566 = vmatmul.mubr.bf16.gmra.mxu0 %v493
        %v567 = vpop.f32.mrf.mxu0
        %v568 = vadd.f32 %v435, %v567
        %v569 = vpop.f32.mrf.mxu0
        %v570 = vpop.f32.mrf.mxu0
        %v571 = vadd.f32 %v438, %v570
        %v572 = vpop.f32.mrf.mxu0
        %573 = vmatprep.mubr.bf16.mxu0 0
        %574 = vmatmul.mubr.bf16.gmra.mxu0 %v496
        %v575 = vpop.f32.mrf.mxu0
        %v576 = vadd.f32 %v443, %v575
        %v577 = vpop.f32.mrf.mxu0
        %v578 = vpop.f32.mrf.mxu0
        %v579 = vadd.f32 %v446, %v578
        %v580 = vpop.f32.mrf.mxu0
        %581 = vmatprep.mubr.bf16.mxu0 0
        %582 = vmatmul.mubr.bf16.gmra.mxu0 %v499
        %v583 = vpop.f32.mrf.mxu0
        %v584 = vadd.f32 %v451, %v583
        %v585 = vpop.f32.mrf.mxu0
        %v586 = vpop.f32.mrf.mxu0
        %v587 = vpop.f32.mrf.mxu0
        %588 = vdwg.mxu0
        %v589 = vtanh.pop %v536
        %v590 = vtanh.pop %v539
        %v591 = vtanh.pop %v544
        %v592 = vtanh.pop %v547
        %v593 = vtanh.pop %v552
        %v594 = vtanh.pop %v555
        %v595 = vtanh.pop %v560
        %v596 = vtanh.pop %v563
        %v597 = vtanh.pop %v568
        %v598 = vtanh.pop %v571
        %v599 = vtanh.pop %v576
        %v600 = vtanh.pop %v579
        %v601 = vtanh.pop %v584
        %v602 = vpack.c.bf16 %v590, %v589
        %v603 = vpack.c.bf16 %v592, %v591
        %v604 = vpack.c.bf16 %v594, %v593
        %v605 = vpack.c.bf16 %v596, %v595
        %v606 = vpack.c.bf16 %v598, %v597
        %v607 = vpack.c.bf16 %v600, %v599
        %v608 = vpack.c.bf16 %v601, %v601
        %v616 = vunpack.c.l.b16 %v602
        %v617 = vunpack.c.h.b16 %v602
        %v618 = vunpack.c.l.b16 %v603
        %v619 = vunpack.c.h.b16 %v603
        %v620 = vunpack.c.l.b16 %v604
        %v621 = vunpack.c.h.b16 %v604
        %v622 = vunpack.c.l.b16 %v605
        %v623 = vunpack.c.h.b16 %v605
        %v624 = vunpack.c.l.b16 %v606
        %v625 = vunpack.c.h.b16 %v606
        %v626 = vunpack.c.l.b16 %v607
        %v627 = vunpack.c.h.b16 %v607
        %v628 = vunpack.c.l.b16 %v608
        %v629 = vpack.c.b16 %v616, %v616
        %v630 = vpack.c.b16 %v617, %v617
        %v631 = vpack.c.b16 %v618, %v618
        %v632 = vpack.c.b16 %v619, %v619
        %v633 = vpack.c.b16 %v620, %v620
        %v634 = vpack.c.b16 %v621, %v621
        %v635 = vpack.c.b16 %v622, %v622
        %v636 = vpack.c.b16 %v623, %v623
        %v637 = vpack.c.b16 %v624, %v624
        %v638 = vpack.c.b16 %v625, %v625
        %v639 = vpack.c.b16 %v626, %v626
        %v640 = vpack.c.b16 %v627, %v627
        %v641 = vpack.c.b16 %v628, %v628
        %655 = vst [vmem:[%s231] sm:$0xf] %v629
        %656 = vst [vmem:[%s231 + $0x4] sm:$0xf] %v630
        %657 = vst [vmem:[%s231 + $0x8] sm:$0xf] %v631
        %658 = vst [vmem:[%s231 + $0xc] sm:$0xf] %v632
        %659 = vst [vmem:[%s231 + $0x10] sm:$0xf] %v633
        %660 = vst [vmem:[%s231 + $0x14] sm:$0xf] %v634
        %661 = vst [vmem:[%s231 + $0x18] sm:$0xf] %v635
        %662 = vst [vmem:[%s231 + $0x1c] sm:$0xf] %v636
        %663 = vst [vmem:[%s231 + $0x20] sm:$0xf] %v637
        %664 = vst [vmem:[%s231 + $0x24] sm:$0xf] %v638
        %665 = vst [vmem:[%s231 + $0x28] sm:$0xf] %v639
        %666 = vst [vmem:[%s231 + $0x2c] sm:$0xf] %v640
        %667 = vst [vmem:[%s231 + $0x30] sm:$0xf] %v641
        %s668 = sand.u32 %s120, 1
        %s669 = scalar_lea.sflag [#allocation3], %s668
        %s670 = sand.u32 %s120, 1
        %s671 = smul.addr %s670, 52
        %s672 = scalar_lea.vmem [#allocation2], %s671
        // Predicated region
        $region37: #{tpu_custom_call.1} parent=35 // pred_check
          %p673 = pneg %p130
        $region38: #{tpu_custom_call.1} parent=35 // pred_check_branch
          %675 = sbr.rel (%p673) target = $region40
        $region39: #{tpu_custom_call.1} parent=35 // pred_region
          %s676 = smul.u32 13, %s18
          %s677 = ssub.s32 25, %s676
          %p678 = scmp.lt.s32.totalorder %s677, 13
          %s679 = scalar_select %p678, %s677, 13
          %s680 = smul.u32 64, %s679
          %s682 = ssub.s32 832, %s680
          %683 = vsyncadd %s669, %s682
          %p684 = scmp.ne.s32.totalorder 0, %s680
          %s685 = smul.addr %s676, 64
          %s686 = scalar_lea.hbm %s4, %s685
          %s687 = smul.u32 4, %s679
          %s688 = sshll.u32 %s672, 4
          %s689 = int_to_ptr.vmem [resolvable:$true] %s688
          %s690 = sshll.u32 %s687, 4
          %694 = dma.vmem_to_hbm [thread:$0]  (%p684), %s689, %s690, %s686, %s669, 64, 64, 4
        $region40: #{tpu_custom_call.1} parent=35 // pred_fallthru
          _
      $region36: #{tpu_custom_call.1} parent=5 // pred_fallthru
        _
      %p695 = scmp.le.s32.totalorder 2, %s13
      // Predicated region
      $region41: #{tpu_custom_call.1} parent=5 // pred_check
        %p696 = pneg %p695
      $region42: #{tpu_custom_call.1} parent=5 // pred_check_branch
        %698 = sbr.rel (%p696) target = $region44
      $region43: #{tpu_custom_call.1} parent=5 // pred_region
        %s699 = ssub.s32 %s13, 2
        // Predicated region
        $region45: #{tpu_custom_call.1} parent=43 // pred_check
          %p700 = pneg %p136
        $region46: #{tpu_custom_call.1} parent=43 // pred_check_branch
          %702 = sbr.rel (%p700) target = $region48
        $region47: #{tpu_custom_call.1} parent=43 // pred_region
          %s703 = sand.u32 %s121, 1
          %s704 = scalar_lea.sflag [#allocation3], %s703
          %s705 = sand.u32 %s121, 1
          %s706 = smul.addr %s705, 52
          %s707 = scalar_lea.vmem [#allocation2], %s706
          %708 = dma.done %s704, 832
        $region48: #{tpu_custom_call.1} parent=43 // pred_fallthru
          _
      $region44: #{tpu_custom_call.1} parent=5 // pred_fallthru
        _
    $region6: #{tpu_custom_call.1} parent=1 // loop_footer
      %s17 = sadd.s32 1, %s13
    $region7: #{tpu_custom_call.1} parent=1 // loop_footer_branch
      %12 = sbr.rel target = $region3
    $region8: #{tpu_custom_call.1} parent=1 // loop_exit
      _
    %709 = vsyncpa [#allocation3], 1
    %s710 = scalar_lea.sflag [#allocation3], 1
    %711 = vsyncpa %s710, 1

</llo_original>
